<compile_context>
chip_gen: v5e
topology: v5e:2x2
jax: 0.10.0
libtpu: 0.0.40
codegen_flags: <defaults>
</compile_context>

<pallas_src>
import math
import jax
import jax.numpy as jnp
from jax.experimental import pallas as pl
from jax.experimental.pallas import tpu as pltpu


def _round_up(v, m):
    return (v + m - 1) // m * m


def _cosnorm_kernel(scale_ref, x_ref, wt_ref, o_ref, acc_ref, ssx_ref, ssw_ref):
    # scale_ref: (1,1) f32 in SMEM
    # x_ref:     (tm, tk) VMEM tile of X
    # wt_ref:    (tk, tn) VMEM tile of W^T
    # o_ref:     (tm, tn) output tile
    # acc_ref:   (tm, tn) f32 accumulator          (persistent across K)
    # ssx_ref:   (tm, 1)  f32 sum_k x^2 per row    (persistent across K)
    # ssw_ref:   (1, tn)  f32 sum_k w^2 per class  (persistent across K)
    k = pl.program_id(2)
    nk = pl.num_programs(2)

    @pl.when(k == 0)
    def _():
        acc_ref[...] = jnp.zeros_like(acc_ref)
        ssx_ref[...] = jnp.zeros_like(ssx_ref)
        ssw_ref[...] = jnp.zeros_like(ssw_ref)

    x = x_ref[...]
    wt = wt_ref[...]

    # Raw partial product on the MXU, native operand dtype, f32 accumulation.
    acc_ref[...] += jnp.dot(x, wt, preferred_element_type=jnp.float32)

    # Sum-of-squares for the deferred normalization (norm math in f32).
    xf = x.astype(jnp.float32)
    wf = wt.astype(jnp.float32)
    ssx_ref[...] += jnp.sum(xf * xf, axis=1, keepdims=True)   # (tm, 1)
    ssw_ref[...] += jnp.sum(wf * wf, axis=0, keepdims=True)   # (1, tn)

    @pl.when(k == nk - 1)
    def _():
        s = scale_ref[0, 0].astype(jnp.float32)
        inv_x = s * jax.lax.rsqrt(ssx_ref[...])   # (tm, 1)  -- EUP rsqrt, scale folded in
        inv_w = jax.lax.rsqrt(ssw_ref[...])       # (1, tn)
        o_ref[...] = (acc_ref[...] * inv_x * inv_w).astype(o_ref.dtype)


def cosnorm_classifier_comix(x, weight, scale, *, tm=256, tn=256, tk=512):
    """x: (N, in_dims), weight: (out_dims, in_dims), scale: (1,) -> (N, out_dims)."""
    N, D = x.shape
    C, D2 = weight.shape
    assert D == D2, "in_dims mismatch"

    # Wrapper-side layout plumbing: W^T so the kernel does (N,D)@(D,C) directly.
    wt = weight.T  # (D, C)
    scale2d = jnp.asarray(scale, dtype=jnp.float32).reshape(1, 1)

    # Tile sizes: sublane axis multiple of 8, lane axes multiple of 128 (keeps
    # the output lane-dense). Defaults are MXU-shaped and VMEM-safe on v7x's
    # 64 MiB (well under the 32 MiB scoped default even double-buffered).
    tm = min(tm, _round_up(N, 8))
    tn = min(tn, _round_up(C, 128))
    tk = min(tk, _round_up(D, 128))

    Np = _round_up(N, tm)
    Cp = _round_up(C, tn)
    Dp = _round_up(D, tk)

    if (Np, Dp) != (N, D):
        x = jnp.pad(x, ((0, Np - N), (0, Dp - D)))
    if (Dp, Cp) != (D, C):
        wt = jnp.pad(wt, ((0, Dp - D), (0, Cp - C)))
    # Zero padding contributes 0 to both the matmul and the sum-of-squares;
    # padded rows/cols may hold NaN (0 * inf) but are sliced off below.

    grid = (Np // tm, Cp // tn, Dp // tk)

    out = pl.pallas_call(
        _cosnorm_kernel,
        out_shape=jax.ShapeDtypeStruct((Np, Cp), x.dtype),
        grid_spec=pltpu.PrefetchScalarGridSpec(
            num_scalar_prefetch=0,
            grid=grid,
            in_specs=[
                pl.BlockSpec((1, 1), lambda i, j, k: (0, 0),
                             memory_space=pltpu.MemorySpace.SMEM),   # scale
                pl.BlockSpec((tm, tk), lambda i, j, k: (i, k)),      # X tile
                pl.BlockSpec((tk, tn), lambda i, j, k: (k, j)),      # W^T tile
            ],
            out_specs=pl.BlockSpec((tm, tn), lambda i, j, k: (i, j)),
            scratch_shapes=[
                pltpu.VMEM((tm, tn), jnp.float32),   # matmul accumulator
                pltpu.VMEM((tm, 1), jnp.float32),    # sum_k x^2 per row
                pltpu.VMEM((1, tn), jnp.float32),    # sum_k w^2 per class
            ],
        ),
        compiler_params=pltpu.CompilerParams(
            dimension_semantics=("parallel", "parallel", "arbitrary"),
        ),
    )(scale2d, x, wt)

    return out[:N, :C]


def reference(x, weight, scale):
    norm_x = jnp.linalg.norm(x, ord=2, axis=1, keepdims=True)
    ex = x / norm_x
    ew = weight / jnp.linalg.norm(weight, ord=2, axis=1, keepdims=True)
    return (scale[0] * ex) @ ew.T


if __name__ == "__main__":
    # Module hyperparams (small, consistent with the module's __init__).
    in_dims, out_dims = 128, 16
    batch = 8
    scale_val = 16.0
    # NOTE: margin / init_std appear in __init__ but are unused in forward.

    key = jax.random.PRNGKey(0)
    kx, kw = jax.random.split(key)

    # weight ~ U(-stdv, stdv), stdv = 1/sqrt(in_dims), matching reset_parameters().
    stdv = 1.0 / math.sqrt(in_dims)
    weight = jax.random.uniform(kw, (out_dims, in_dims), jnp.float32,
                                minval=-stdv, maxval=stdv)
    scale = jnp.array([scale_val], dtype=jnp.float32)

    x = jax.random.normal(kx, (batch, in_dims), jnp.float32)

    out = cosnorm_classifier_comix(x, weight, scale)
    out = jax.block_until_ready(out)

    ref = reference(x, weight, scale)
    assert out.shape == (batch, out_dims)
    assert jnp.allclose(out, ref, atol=1e-4, rtol=1e-4), "mismatch vs reference"

    print("KERNEL_OK")
</pallas_src>

<mosaic_0001>
module attributes {stable_mosaic.version = 11 : i64} {
  func.func @_cosnorm_kernel(%arg0: i32, %arg1: i32, %arg2: i32, %arg3: memref<1x1xf32, #tpu.memory_space<smem>>, %arg4: memref<8x128xf32, #tpu.memory_space<vmem>>, %arg5: memref<128x128xf32, #tpu.memory_space<vmem>>, %arg6: memref<8x128xf32, #tpu.memory_space<vmem>>, %arg7: memref<8x128xf32, #tpu.memory_space<vmem>>, %arg8: memref<8x1xf32, #tpu.memory_space<vmem>>, %arg9: memref<1x128xf32, #tpu.memory_space<vmem>>) attributes {dimension_semantics = [#tpu.dimension_semantics<parallel>, #tpu.dimension_semantics<parallel>, #tpu.dimension_semantics<arbitrary>], iteration_bounds = array<i64: 1, 1, 1>, scalar_prefetch = 0 : i64, scratch_operands = 3 : i64, tpu.core_type = #tpu.core_type<tc>, window_params = [{transform_indices = @transform_0, window_bounds = array<i64: 1, 1>}, {transform_indices = @transform_1, window_bounds = array<i64: 8, 128>}, {transform_indices = @transform_2, window_bounds = array<i64: 128, 128>}, {transform_indices = @transform_3, window_bounds = array<i64: 8, 128>}]} {
    %c0_i32 = arith.constant 0 : i32
    %0 = arith.cmpi eq, %arg2, %c0_i32 : i32
    %1 = arith.extui %0 : i1 to i32
    %c0_i32_0 = arith.constant 0 : i32
    %2 = arith.cmpi ne, %1, %c0_i32_0 : i32
    scf.if %2 {
      %cst_20 = arith.constant 0.000000e+00 : f32
      %24 = vector.broadcast %cst_20 : f32 to vector<8x128xf32>
      %c0_21 = arith.constant 0 : index
      %c0_22 = arith.constant 0 : index
      %25 = vector.load %arg7[%c0_21, %c0_22] : memref<8x128xf32, #tpu.memory_space<vmem>>, vector<8x128xf32>
      tpu.vector_store %arg7[%c0_21, %c0_22], %24 {strides = array<i32>} : memref<8x128xf32, #tpu.memory_space<vmem>>, vector<8x128xf32>,
      %cst_23 = arith.constant 0.000000e+00 : f32
      %26 = vector.broadcast %cst_23 : f32 to vector<8x1xf32>
      %c0_24 = arith.constant 0 : index
      %c0_25 = arith.constant 0 : index
      %27 = vector.load %arg8[%c0_24, %c0_25] : memref<8x1xf32, #tpu.memory_space<vmem>>, vector<8x1xf32>
      tpu.vector_store %arg8[%c0_24, %c0_25], %26 {strides = array<i32>} : memref<8x1xf32, #tpu.memory_space<vmem>>, vector<8x1xf32>,
      %cst_26 = arith.constant 0.000000e+00 : f32
      %28 = vector.broadcast %cst_26 : f32 to vector<1x128xf32>
      %c0_27 = arith.constant 0 : index
      %c0_28 = arith.constant 0 : index
      %29 = vector.load %arg9[%c0_27, %c0_28] : memref<1x128xf32, #tpu.memory_space<vmem>>, vector<1x128xf32>
      tpu.vector_store %arg9[%c0_27, %c0_28], %28 {strides = array<i32>} : memref<1x128xf32, #tpu.memory_space<vmem>>, vector<1x128xf32>,
    } else {
    }
    %c0 = arith.constant 0 : index
    %c0_1 = arith.constant 0 : index
    %3 = vector.load %arg4[%c0, %c0_1] : memref<8x128xf32, #tpu.memory_space<vmem>>, vector<8x128xf32>
    %c0_2 = arith.constant 0 : index
    %c0_3 = arith.constant 0 : index
    %4 = vector.load %arg5[%c0_2, %c0_3] : memref<128x128xf32, #tpu.memory_space<vmem>>, vector<128x128xf32>
    %c0_4 = arith.constant 0 : index
    %c0_5 = arith.constant 0 : index
    %5 = vector.load %arg7[%c0_4, %c0_5] : memref<8x128xf32, #tpu.memory_space<vmem>>, vector<8x128xf32>
    %cst = arith.constant dense<0.000000e+00> : vector<8x128xf32>
    %6 = tpu.matmul %3, %4, %cst {dimension_numbers = #tpu.dot_dimension_numbers<[1], [0], [0], [1], [0, 0, 1, 1], [], []>} : vector<8x128xf32>, vector<128x128xf32>, vector<8x128xf32> -> vector<8x128xf32>
    %7 = arith.addf %5, %6 : vector<8x128xf32>
    %c0_6 = arith.constant 0 : index
    %c0_7 = arith.constant 0 : index
    %8 = vector.load %arg7[%c0_6, %c0_7] : memref<8x128xf32, #tpu.memory_space<vmem>>, vector<8x128xf32>
    tpu.vector_store %arg7[%c0_6, %c0_7], %7 {strides = array<i32>} : memref<8x128xf32, #tpu.memory_space<vmem>>, vector<8x128xf32>,
    %c0_8 = arith.constant 0 : index
    %c0_9 = arith.constant 0 : index
    %9 = vector.load %arg8[%c0_8, %c0_9] : memref<8x1xf32, #tpu.memory_space<vmem>>, vector<8x1xf32>
    %10 = arith.mulf %3, %3 : vector<8x128xf32>
    %cst_10 = arith.constant dense<0.000000e+00> : vector<8xf32>
    %11 = vector.multi_reduction <add>, %10, %cst_10 [1] : vector<8x128xf32> to vector<8xf32>
    %12 = vector.shape_cast %11 : vector<8xf32> to vector<8x1xf32>
    %13 = arith.addf %9, %12 : vector<8x1xf32>
    %c0_11 = arith.constant 0 : index
    %c0_12 = arith.constant 0 : index
    %14 = vector.load %arg8[%c0_11, %c0_12] : memref<8x1xf32, #tpu.memory_space<vmem>>, vector<8x1xf32>
    tpu.vector_store %arg8[%c0_11, %c0_12], %13 {strides = array<i32>} : memref<8x1xf32, #tpu.memory_space<vmem>>, vector<8x1xf32>,
    %c0_13 = arith.constant 0 : index
    %c0_14 = arith.constant 0 : index
    %15 = vector.load %arg9[%c0_13, %c0_14] : memref<1x128xf32, #tpu.memory_space<vmem>>, vector<1x128xf32>
    %16 = arith.mulf %4, %4 : vector<128x128xf32>
    %cst_15 = arith.constant dense<0.000000e+00> : vector<128xf32>
    %17 = vector.multi_reduction <add>, %16, %cst_15 [0] : vector<128x128xf32> to vector<128xf32>
    %18 = vector.shape_cast %17 : vector<128xf32> to vector<1x128xf32>
    %19 = arith.addf %15, %18 : vector<1x128xf32>
    %c0_16 = arith.constant 0 : index
    %c0_17 = arith.constant 0 : index
    %20 = vector.load %arg9[%c0_16, %c0_17] : memref<1x128xf32, #tpu.memory_space<vmem>>, vector<1x128xf32>
    tpu.vector_store %arg9[%c0_16, %c0_17], %19 {strides = array<i32>} : memref<1x128xf32, #tpu.memory_space<vmem>>, vector<1x128xf32>,
    %c0_i32_18 = arith.constant 0 : i32
    %21 = arith.cmpi eq, %arg2, %c0_i32_18 : i32
    %22 = arith.extui %21 : i1 to i32
    %c0_i32_19 = arith.constant 0 : i32
    %23 = arith.cmpi ne, %22, %c0_i32_19 : i32
    scf.if %23 {
      %c0_20 = arith.constant 0 : index
      %c0_21 = arith.constant 0 : index
      %24 = memref.load %arg3[%c0_20, %c0_21] : memref<1x1xf32, #tpu.memory_space<smem>>
      %c0_22 = arith.constant 0 : index
      %c0_23 = arith.constant 0 : index
      %25 = vector.load %arg8[%c0_22, %c0_23] : memref<8x1xf32, #tpu.memory_space<vmem>>, vector<8x1xf32>
      %26 = math.rsqrt %25 : vector<8x1xf32>
      %27 = vector.broadcast %24 : f32 to vector<8x1xf32>
      %28 = arith.mulf %27, %26 : vector<8x1xf32>
      %c0_24 = arith.constant 0 : index
      %c0_25 = arith.constant 0 : index
      %29 = vector.load %arg9[%c0_24, %c0_25] : memref<1x128xf32, #tpu.memory_space<vmem>>, vector<1x128xf32>
      %30 = math.rsqrt %29 : vector<1x128xf32>
      %c0_26 = arith.constant 0 : index
      %c0_27 = arith.constant 0 : index
      %31 = vector.load %arg7[%c0_26, %c0_27] : memref<8x128xf32, #tpu.memory_space<vmem>>, vector<8x128xf32>
      %32 = vector.broadcast %28 : vector<8x1xf32> to vector<8x128xf32>
      %33 = arith.mulf %31, %32 : vector<8x128xf32>
      %34 = vector.broadcast %30 : vector<1x128xf32> to vector<8x128xf32>
      %35 = arith.mulf %33, %34 : vector<8x128xf32>
      %c0_28 = arith.constant 0 : index
      %c0_29 = arith.constant 0 : index
      %36 = vector.load %arg6[%c0_28, %c0_29] : memref<8x128xf32, #tpu.memory_space<vmem>>, vector<8x128xf32>
      tpu.vector_store %arg6[%c0_28, %c0_29], %35 {strides = array<i32>} : memref<8x128xf32, #tpu.memory_space<vmem>>, vector<8x128xf32>,
    } else {
    }
    return
  }
  func.func @transform_0(%arg0: i32, %arg1: i32, %arg2: i32) -> (i32, i32) {
    %c0_i32 = arith.constant 0 : i32
    %c0_i32_0 = arith.constant 0 : i32
    %c0_i32_1 = arith.constant 0 : i32
    return %c0_i32, %c0_i32_0 : i32, i32
  }
  func.func @transform_1(%arg0: i32, %arg1: i32, %arg2: i32) -> (i32, i32) {
    %c0_i32 = arith.constant 0 : i32
    return %arg0, %arg2 : i32, i32
  }
  func.func @transform_2(%arg0: i32, %arg1: i32, %arg2: i32) -> (i32, i32) {
    %c0_i32 = arith.constant 0 : i32
    return %arg2, %arg1 : i32, i32
  }
  func.func @transform_3(%arg0: i32, %arg1: i32, %arg2: i32) -> (i32, i32) {
    %c0_i32 = arith.constant 0 : i32
    return %arg0, %arg1 : i32, i32
  }
}

</mosaic_0001>

<llo_original>
// kernel: tpu_custom_call.1
$region0: #{tpu_custom_call.1}
  #allocation0 [shape = 'u32[]', space=smem, size = 0x4, offset = 0x4, fixed_abs, tag = 'smem constant byte address 0x4 - core index']
  #allocation1 [shape = 'u32[72,128]{1,0:T(1,128)}', space=vmem, size = 0x9000, scoped, tag = 'internal scratch']
  #allocation2 [shape = 'f32[8,128]{1,0:T(8,128)}', space=vmem, size = 0x1000, scoped, tag = 'scratch operand']
  #allocation3 [shape = 'f32[8,1]{1,0:T(8,128)}', space=vmem, size = 0x1000, scoped, tag = 'scratch operand']
  #allocation4 [shape = 'f32[1,128]{1,0:T(1,128)}', space=vmem, size = 0x200, scoped, tag = 'scratch operand']
  #allocation5 [shape = 'f32[1,1]{1,0:T(1,128)S(6)}', space=smem, size = 0x200, scoped, tag = 'scoped memory for tpu_custom_call.1']
  %s0 = inlined_call_operand.<no memory space> [shape: f32[1,1], index: 0, kind: input, shape index: {}]
  %s1 = inlined_call_operand.hbm [shape: f32[8,128], index: 1, kind: input, shape index: {}]
  %s2 = inlined_call_operand.hbm [shape: f32[128,128], index: 2, kind: input, shape index: {}]
  %s3 = inlined_call_operand.hbm [shape: f32[8,128], index: 3, kind: output, shape index: {}]
  %s4 = sld [smem:[#allocation0]]
  $region38: #{tpu_custom_call.1} parent=0
    _
  %s6 = ssub.s32 1, %s4
  %s7 = scalar_select 0, %s6, %s4
  %8 = sst [smem:[#allocation5]] %s0
  $region1: #{tpu_custom_call.1} parent=0
    #allocation6 [shape = 'u8[4096]{0}', space=vmem, size = 0x1000, scoped, tag = 'input window, operand 1, single buffered']
    #allocation7 [shape = 's32[1]{0}', space=sflag, size = 0x4, scoped, tag = 'scoped memory for tpu_custom_call.1']
    #allocation8 [shape = 's32[1]{0}', space=sflag, size = 0x4, scoped, tag = 'scoped memory for tpu_custom_call.1']
    #allocation9 [shape = 'u8[65536]{0}', space=vmem, size = 0x10000, scoped, tag = 'input window, operand 2, single buffered']
    #allocation10 [shape = 's32[1]{0}', space=sflag, size = 0x4, scoped, tag = 'scoped memory for tpu_custom_call.1']
    #allocation11 [shape = 'u8[4096]{0}', space=vmem, size = 0x1000, scoped, tag = 'output window, operand 0, single buffered']
    %9 = vsyncpa [#allocation7], 0
    %10 = vsyncpa [#allocation10], 0
    %11 = vsyncpa [#allocation8], 0
    // Predicated region
    $region2: #{tpu_custom_call.1} parent=1 // pred_check
      _
    $region3: #{tpu_custom_call.1} parent=1 // pred_check_branch
      %13 = sbr.rel (0) target = $region5
    $region4: #{tpu_custom_call.1} parent=1 // pred_region
      _
    $region5: #{tpu_custom_call.1} parent=1 // pred_fallthru
      _
    // Predicated region
    $region6: #{tpu_custom_call.1} parent=1 // pred_check
      _
    $region7: #{tpu_custom_call.1} parent=1 // pred_check_branch
      %15 = sbr.rel (0) target = $region9
    $region8: #{tpu_custom_call.1} parent=1 // pred_region
      %17 = vsyncadd [#allocation7], 0
      %s19 = sshll.u32 %s1, 4
      %s20 = int_to_ptr.hbm [resolvable:$true] %s19
      %s21 = sshll.u32 [#allocation6], 4
      %s22 = int_to_ptr.vmem [resolvable:$true] %s21
      %24 = dma.hbm_to_vmem [thread:$0]  %s20, 128, %s22, [#allocation7]
    $region9: #{tpu_custom_call.1} parent=1 // pred_fallthru
      _
    // Predicated region
    $region10: #{tpu_custom_call.1} parent=1 // pred_check
      _
    $region11: #{tpu_custom_call.1} parent=1 // pred_check_branch
      %26 = sbr.rel (0) target = $region13
    $region12: #{tpu_custom_call.1} parent=1 // pred_region
      %28 = vsyncadd [#allocation10], 0
      %s29 = sshll.u32 %s2, 4
      %s30 = int_to_ptr.hbm [resolvable:$true] %s29
      %s31 = sshll.u32 [#allocation9], 4
      %s32 = int_to_ptr.vmem [resolvable:$true] %s31
      %37 = dma.hbm_to_vmem [thread:$0]  %s30, 2048, %s32, [#allocation10], 128, 128, 8
    $region13: #{tpu_custom_call.1} parent=1 // pred_fallthru
      _
    // Predicated region
    $region14: #{tpu_custom_call.1} parent=1 // pred_check
      _
    $region15: #{tpu_custom_call.1} parent=1 // pred_check_branch
      %39 = sbr.rel (0) target = $region17
    $region16: #{tpu_custom_call.1} parent=1 // pred_region
      %41 = dma.done [#allocation7], 128
    $region17: #{tpu_custom_call.1} parent=1 // pred_fallthru
      _
    // Predicated region
    $region18: #{tpu_custom_call.1} parent=1 // pred_check
      _
    $region19: #{tpu_custom_call.1} parent=1 // pred_check_branch
      %43 = sbr.rel (0) target = $region21
    $region20: #{tpu_custom_call.1} parent=1 // pred_region
      %45 = dma.done [#allocation10], 2048
    $region21: #{tpu_custom_call.1} parent=1 // pred_fallthru
      _
    %p46 = scmp.eq.s32.totalorder 0, 0
    // Predicated region
    $region22: #{tpu_custom_call.1} parent=1 // pred_check
      %p47 = pneg %p46
    $region23: #{tpu_custom_call.1} parent=1 // pred_check_branch
      %49 = sbr.rel (%p47) target = $region25
    $region24: #{tpu_custom_call.1} parent=1 // pred_region
      %50 = vst [vmem:[#allocation2] sm:$0xff] 0.0
      %vm51 = vcmask 7168
      %52 = vst.msk [vmem:[#allocation3] sm:$0xff] %vm51, 0.0
      %53 = vst [vmem:[#allocation4] sm:$0x1] 0.0
    $region25: #{tpu_custom_call.1} parent=1 // pred_fallthru
      _
    %v54 = vld [vmem:[#allocation6] sm:$0xff]
    %v55 = vld [vmem:[#allocation9] sm:$0xff]
    %v56 = vld [vmem:[#allocation9 + $0x8] sm:$0xff]
    %v57 = vld [vmem:[#allocation9 + $0x10] sm:$0xff]
    %v58 = vld [vmem:[#allocation9 + $0x18] sm:$0xff]
    %v59 = vld [vmem:[#allocation9 + $0x20] sm:$0xff]
    %v60 = vld [vmem:[#allocation9 + $0x28] sm:$0xff]
    %v61 = vld [vmem:[#allocation9 + $0x30] sm:$0xff]
    %v62 = vld [vmem:[#allocation9 + $0x38] sm:$0xff]
    %v63 = vld [vmem:[#allocation9 + $0x40] sm:$0xff]
    %v64 = vld [vmem:[#allocation9 + $0x48] sm:$0xff]
    %v65 = vld [vmem:[#allocation9 + $0x50] sm:$0xff]
    %v66 = vld [vmem:[#allocation9 + $0x58] sm:$0xff]
    %v67 = vld [vmem:[#allocation9 + $0x60] sm:$0xff]
    %v68 = vld [vmem:[#allocation9 + $0x68] sm:$0xff]
    %v69 = vld [vmem:[#allocation9 + $0x70] sm:$0xff]
    %v70 = vld [vmem:[#allocation9 + $0x78] sm:$0xff]
    %v71 = vld [vmem:[#allocation2] sm:$0xff]
    %72 = vmatpush.msra.mxu0 %v70
    %73 = vmatpush.msra.mxu0 %v69
    %74 = vmatpush.msra.mxu0 %v68
    %75 = vmatpush.msra.mxu0 %v67
    %76 = vmatpush.msra.mxu0 %v66
    %77 = vmatpush.msra.mxu0 %v65
    %78 = vmatpush.msra.mxu0 %v64
    %79 = vmatpush.msra.mxu0 %v63
    %80 = vmatpush.msra.mxu0 %v62
    %81 = vmatpush.msra.mxu0 %v61
    %82 = vmatpush.msra.mxu0 %v60
    %83 = vmatpush.msra.mxu0 %v59
    %84 = vmatpush.msra.mxu0 %v58
    %85 = vmatpush.msra.mxu0 %v57
    %86 = vmatpush.msra.mxu0 %v56
    %87 = vmatpush.msra.mxu0 %v55
    %88 = vmatmul.f32.gmra.mxu0 %v54
    %v89 = vpop.f32.mrf.mxu0
    %v90 = vadd.f32 0.0, %v89
    %91 = vdwg.mxu0
    %v92 = vadd.f32 %v71, %v90
    %93 = vst [vmem:[#allocation2] sm:$0xff] %v92
    %v94 = vld [vmem:[#allocation3] sm:$0xff]
    %v95 = vmul.f32 %v54, %v54
    %96 = vadd.xlane.f32.xlu0 %v95
    %v97 = vpop.xlane.xlu0 %96
    %v98 = vadd.f32 %v94, %v97
    %vm99 = vcmask 7168
    %100 = vst.msk [vmem:[#allocation3] sm:$0xff] %vm99, %v98
    %v101 = vld [vmem:[#allocation4] sm:$0x1]
    %v102 = vmul.f32 %v55, %v55
    %v103 = vmul.f32 %v56, %v56
    %v104 = vmul.f32 %v57, %v57
    %v105 = vmul.f32 %v58, %v58
    %v106 = vmul.f32 %v59, %v59
    %v107 = vmul.f32 %v60, %v60
    %v108 = vmul.f32 %v61, %v61
    %v109 = vmul.f32 %v62, %v62
    %v110 = vmul.f32 %v63, %v63
    %v111 = vmul.f32 %v64, %v64
    %v112 = vmul.f32 %v65, %v65
    %v113 = vmul.f32 %v66, %v66
    %v114 = vmul.f32 %v67, %v67
    %v115 = vmul.f32 %v68, %v68
    %v116 = vmul.f32 %v69, %v69
    %v117 = vmul.f32 %v70, %v70
    %v118 = vadd.f32 %v102, %v103
    %v119 = vadd.f32 %v118, %v104
    %v120 = vadd.f32 %v119, %v105
    %v121 = vadd.f32 %v120, %v106
    %v122 = vadd.f32 %v121, %v107
    %v123 = vadd.f32 %v122, %v108
    %v124 = vadd.f32 %v123, %v109
    %v125 = vadd.f32 %v124, %v110
    %v126 = vadd.f32 %v125, %v111
    %v127 = vadd.f32 %v126, %v112
    %v128 = vadd.f32 %v127, %v113
    %v129 = vadd.f32 %v128, %v114
    %v130 = vadd.f32 %v129, %v115
    %v131 = vadd.f32 %v130, %v116
    %v132 = vadd.f32 %v131, %v117
    %v133 = vrot.slane %v132, 4
    %v134 = vadd.f32 %v132, %v133
    %v135 = vrot.slane %v134, 2
    %v136 = vadd.f32 %v134, %v135
    %v137 = vrot.slane %v136, 1
    %v138 = vadd.f32 %v136, %v137
    %v139 = vadd.f32 %v101, %v138
    %140 = vst [vmem:[#allocation4] sm:$0x1] %v139
    // Predicated region
    $region26: #{tpu_custom_call.1} parent=1 // pred_check
      %p141 = pneg %p46
    $region27: #{tpu_custom_call.1} parent=1 // pred_check_branch
      %143 = sbr.rel (%p141) target = $region29
    $region28: #{tpu_custom_call.1} parent=1 // pred_region
      %s144 = sld [smem:[#allocation5]]
      %v145 = vld [vmem:[#allocation3] sm:$0xff]
      %v146 = vrsqrt.pop %v145
      %v147 = vmul.f32 %v146, %v145
      %v148 = vmul.f32 %v147, %v146
      %v149 = vmul.f32 0.5, %v148
      %v150 = vsub.f32 1.5, %v149
      %v151 = vmul.f32 %v146, %v150
      %vm152 = vweird.f32 %v145
      %vm153 = vweird.f32 %v146
      %vm154 = vmor %vm152, %vm153
      %v155 = vsel %vm154, %v146, %v151
      %v156 = vstv %s144
      %v157 = vmul.f32 %v156, %v155
      %v158 = vld [vmem:[#allocation4] sm:$0x1]
      %v159 = vrsqrt.pop %v158
      %v160 = vmul.f32 %v159, %v158
      %v161 = vmul.f32 %v160, %v159
      %v162 = vmul.f32 0.5, %v161
      %v163 = vsub.f32 1.5, %v162
      %v164 = vmul.f32 %v159, %v163
      %vm165 = vweird.f32 %v158
      %vm166 = vweird.f32 %v159
      %vm167 = vmor %vm165, %vm166
      %v168 = vsel %vm167, %v159, %v164
      %v169 = vld [vmem:[#allocation2] sm:$0xff]
      %171 = vset.pattern.permute.xlu0 0
      %172 = vperm.xlu0 %171, %v157
      %v173 = vpop.permute.xlu0 %172
      %v175 = vmul.f32 %v169, %v173
      %v177 = vperm.slane %v168, 0
      %v179 = vmul.f32 %v175, %v177
      %180 = vst [vmem:[#allocation11] sm:$0xff] %v179
    $region29: #{tpu_custom_call.1} parent=1 // pred_fallthru
      _
    // Predicated region
    $region30: #{tpu_custom_call.1} parent=1 // pred_check
      _
    $region31: #{tpu_custom_call.1} parent=1 // pred_check_branch
      %182 = sbr.rel (0) target = $region33
    $region32: #{tpu_custom_call.1} parent=1 // pred_region
      %184 = vsyncadd [#allocation8], 0
      %s186 = sshll.u32 [#allocation11], 4
      %s187 = int_to_ptr.vmem [resolvable:$true] %s186
      %s188 = sshll.u32 %s3, 4
      %s189 = int_to_ptr.hbm [resolvable:$true] %s188
      %191 = dma.vmem_to_hbm [thread:$0]  %s187, 128, %s189, [#allocation8]
    $region33: #{tpu_custom_call.1} parent=1 // pred_fallthru
      _
    // Predicated region
    $region34: #{tpu_custom_call.1} parent=1 // pred_check
      _
    $region35: #{tpu_custom_call.1} parent=1 // pred_check_branch
      %193 = sbr.rel (0) target = $region37
    $region36: #{tpu_custom_call.1} parent=1 // pred_region
      %195 = dma.done [#allocation8], 128
    $region37: #{tpu_custom_call.1} parent=1 // pred_fallthru
      _
    %196 = vsyncpa [#allocation7], 1
    %197 = vsyncpa [#allocation10], 1
    %198 = vsyncpa [#allocation8], 1

</llo_original>
